<compile_context>
chip_gen: v7x
topology: tpu7x:2x2x1
jax: 0.10.0
libtpu: 0.0.40
codegen_flags: <defaults>
</compile_context>

<pallas_src>
import jax
import jax.numpy as jnp
from jax.experimental import pallas as pl
from jax.experimental.pallas import tpu as pltpu

# ---- quantizer constants (lava-dl sigma_delta.Neuron.quantize_8bit defaults) ----
_SCALE = 64.0
_STEP = 2.0 / _SCALE          # 1/32  (power of two)
_INV_STEP = 32.0              # exact reciprocal of _STEP
_QLO = -256.0 / _SCALE
_QHI = 255.0 / _SCALE


def _quantize_8bit(v):
    # round(v / step) * step, clamped; multiply by the exact reciprocal (bit-identical).
    return jnp.clip(jnp.round(v * _INV_STEP) * _STEP, _QLO, _QHI)


def _sd_input_kernel(params_ref, x_ref, o_ref):
    """params_ref: SMEM (3,) = [quantized weight, quantized bias, quantized threshold]
       x_ref / o_ref: VMEM (T, tile_s, 128) time-major dense feature tile."""
    w = params_ref[0]
    b = params_ref[1]
    thr = params_ref[2]

    T = x_ref.shape[0]
    ts = x_ref.shape[1]
    lanes = x_ref.shape[2]

    def quant_affine(x_t):
        # quantize + scalar weight/bias, applied per timestep (streamed).
        q = jnp.clip(jnp.round(x_t * _INV_STEP) * _STEP, _QLO, _QHI)
        return q * w + b

    def step(x_t, prev, res, t):
        cur = quant_affine(x_t)
        delta = cur - prev + res
        out = jnp.where(jnp.abs(delta) >= thr, delta, 0.0)
        o_ref[t] = out
        return cur, delta - out

    zeros = jnp.zeros((ts, lanes), jnp.float32)

    if T <= 16:
        # Short, static T: fully unrolled sequential delta scan.
        prev, res = zeros, zeros
        for t in range(T):
            prev, res = step(x_ref[t], prev, res, t)
    else:
        # Longer T: bounded live ranges / code size via fori_loop.
        def body(t, carry):
            prev, res = carry
            return step(x_ref[t], prev, res, t)

        jax.lax.fori_loop(0, T, body, (zeros, zeros), unroll=2)


def _choose_tile_s(S, T, target_block_bytes=1 << 20, vmem_budget_bytes=24 << 20):
    """Pick the number of 128-lane feature groups per block."""
    bytes_per_s = T * 128 * 4
    # Largest tile that hits the target block size and (double-buffered in+out ->
    # 4x live copies) stays inside a conservative VMEM budget (v7x has 64 MiB).
    cap = max(1, min(target_block_bytes // bytes_per_s,
                     vmem_budget_bytes // (4 * bytes_per_s)))
    cap = min(cap, 64)                     # keep the scan's vreg footprint modest
    tile_s = min(S, cap)
    # Keep >= 2 feature blocks when there is enough work (v7x: 2 TensorCores).
    if S >= 16:
        tile_s = min(tile_s, (S + 1) // 2)
    if tile_s >= S:
        return S                           # full axis: any size allowed
    return max(8, (tile_s // 8) * 8)       # partial tile: sublane multiple of 8


def sigma_delta_input(x, weight, bias, threshold):
    """x: (N, C, H, W, T) float32.  Returns delta-encoded output, same shape."""
    N, C, H, W, T = x.shape
    F = N * C * H * W
    S = (F + 127) // 128                   # 128-lane feature groups
    Fp = S * 128

    # glue: flatten features, make time-major; pad only if F is not lane-aligned.
    x2 = x.reshape(F, T).T.astype(jnp.float32)          # (T, F)
    if Fp != F:
        x2 = jnp.pad(x2, ((0, 0), (0, Fp - F)))
    x3 = x2.reshape(T, S, 128)

    tile_s = _choose_tile_s(S, T)
    grid = (pl.cdiv(S, tile_s),)

    # parameter prep (glue): same pre_hook quantizer for weight/bias; threshold on
    # the 1/64 grid.
    # TODO(synk): exact threshold scaling of lava-dl Delta depends on neuron_params;
    #             a 1/64-grid quantization of the configured threshold is used here.
    w_q = _quantize_8bit(jnp.float32(weight))
    b_q = _quantize_8bit(jnp.float32(bias))
    thr_q = jnp.round(jnp.float32(threshold) * _SCALE) / _SCALE
    params = jnp.stack([w_q, b_q, thr_q]).astype(jnp.float32)

    out3 = pl.pallas_call(
        _sd_input_kernel,
        out_shape=jax.ShapeDtypeStruct((T, S, 128), jnp.float32),
        grid_spec=pltpu.PrefetchScalarGridSpec(
            num_scalar_prefetch=0,
            grid=grid,
            in_specs=[
                pl.BlockSpec(memory_space=pltpu.MemorySpace.SMEM),     # params
                pl.BlockSpec((T, tile_s, 128), lambda i: (0, i, 0)),   # x tile
            ],
            out_specs=pl.BlockSpec((T, tile_s, 128), lambda i: (0, i, 0)),
        ),
        compiler_params=pltpu.CompilerParams(
            dimension_semantics=("parallel",)),
    )(params, x3)

    # TODO(synk): downstream slayer blocks could consume the (T, F) time-major slab
    #             directly and skip this output transpose (one full HBM pass).
    return out3.reshape(T, Fp)[:, :F].T.reshape(N, C, H, W, T)


def _reference_forward(x, weight, bias, threshold):
    """Pure-JAX reference of the PyTorch forward (for correctness check)."""
    z = _quantize_8bit(x) * _quantize_8bit(jnp.float32(weight)) \
        + _quantize_8bit(jnp.float32(bias))
    thr = jnp.round(jnp.float32(threshold) * _SCALE) / _SCALE
    zt = jnp.moveaxis(z, -1, 0)                       # (T, ...)

    def body(carry, z_t):
        prev, res = carry
        delta = z_t - prev + res
        out = jnp.where(jnp.abs(delta) >= thr, delta, 0.0)
        return (z_t, delta - out), out

    init = (jnp.zeros_like(zt[0]), jnp.zeros_like(zt[0]))
    _, outs = jax.lax.scan(body, init, zt)
    return jnp.moveaxis(outs, 0, -1)


if __name__ == "__main__":
    key = jax.random.PRNGKey(0)
    weight, bias, threshold = 1.5, 0.25, 0.1

    # main case: F = 2048 features (dense lane-aligned tiles, grid of 2 blocks), T = 8
    N, C, H, W, T = 2, 4, 16, 16, 8
    x = jax.random.normal(key, (N, C, H, W, T), dtype=jnp.float32)
    out = jax.block_until_ready(sigma_delta_input(x, weight, bias, threshold))
    ref = jax.block_until_ready(_reference_forward(x, weight, bias, threshold))
    assert out.shape == x.shape
    assert jnp.allclose(out, ref, rtol=1e-5, atol=1e-5), "mismatch vs reference (T=8)"

    # longer-T case: exercises the fori_loop scan path and the full-axis tile path
    N2, C2, H2, W2, T2 = 1, 2, 8, 8, 32
    x2 = jax.random.normal(jax.random.PRNGKey(1), (N2, C2, H2, W2, T2), dtype=jnp.float32)
    out2 = jax.block_until_ready(sigma_delta_input(x2, weight, bias, threshold))
    ref2 = jax.block_until_ready(_reference_forward(x2, weight, bias, threshold))
    assert out2.shape == x2.shape
    assert jnp.allclose(out2, ref2, rtol=1e-5, atol=1e-5), "mismatch vs reference (T=32)"

    print("KERNEL_OK")
</pallas_src>

<mosaic_0001>
module attributes {stable_mosaic.version = 11 : i64} {
  func.func @_sd_input_kernel(%arg0: i32, %arg1: memref<3xf32, #tpu.memory_space<smem>>, %arg2: memref<8x8x128xf32, #tpu.memory_space<vmem>>, %arg3: memref<8x8x128xf32, #tpu.memory_space<vmem>>) attributes {dimension_semantics = [#tpu.dimension_semantics<parallel>], iteration_bounds = array<i64: 2>, scalar_prefetch = 0 : i64, scratch_operands = 0 : i64, tpu.core_type = #tpu.core_type<tc>, window_params = [{transform_indices = @transform_0, window_bounds = array<i64: 3>}, {transform_indices = @transform_1, window_bounds = array<i64: 8, 8, 128>}, {transform_indices = @transform_2, window_bounds = array<i64: 8, 8, 128>}]} {
    %c0 = arith.constant 0 : index
    %0 = memref.load %arg1[%c0] : memref<3xf32, #tpu.memory_space<smem>>
    %c1 = arith.constant 1 : index
    %1 = memref.load %arg1[%c1] : memref<3xf32, #tpu.memory_space<smem>>
    %c2 = arith.constant 2 : index
    %2 = memref.load %arg1[%c2] : memref<3xf32, #tpu.memory_space<smem>>
    %cst = arith.constant 0.000000e+00 : f32
    %3 = vector.broadcast %cst : f32 to vector<8x128xf32>
    %c0_0 = arith.constant 0 : index
    %c0_1 = arith.constant 0 : index
    %c0_2 = arith.constant 0 : index
    %4 = vector.load %arg2[%c0_0, %c0_1, %c0_2] : memref<8x8x128xf32, #tpu.memory_space<vmem>>, vector<1x8x128xf32>
    %5 = vector.shape_cast %4 : vector<1x8x128xf32> to vector<8x128xf32>
    %cst_3 = arith.constant 3.200000e+01 : f32
    %6 = vector.broadcast %cst_3 : f32 to vector<8x128xf32>
    %7 = arith.mulf %5, %6 : vector<8x128xf32>
    %8 = math.roundeven %7 : vector<8x128xf32>
    %cst_4 = arith.constant 3.125000e-02 : f32
    %9 = vector.broadcast %cst_4 : f32 to vector<8x128xf32>
    %10 = arith.mulf %8, %9 : vector<8x128xf32>
    %cst_5 = arith.constant -4.000000e+00 : f32
    %cst_6 = arith.constant 3.984375 : f32
    %11 = vector.broadcast %cst_5 : f32 to vector<8x128xf32>
    %12 = arith.maximumf %11, %10 : vector<8x128xf32>
    %13 = vector.broadcast %cst_6 : f32 to vector<8x128xf32>
    %14 = arith.minimumf %13, %12 : vector<8x128xf32>
    %15 = vector.broadcast %0 : f32 to vector<8x128xf32>
    %16 = arith.mulf %14, %15 : vector<8x128xf32>
    %17 = vector.broadcast %1 : f32 to vector<8x128xf32>
    %18 = arith.addf %16, %17 : vector<8x128xf32>
    %19 = arith.subf %18, %3 : vector<8x128xf32>
    %20 = arith.addf %19, %3 : vector<8x128xf32>
    %21 = math.absf %20 : vector<8x128xf32>
    %22 = vector.broadcast %2 : f32 to vector<8x128xf32>
    %23 = arith.cmpf oge, %21, %22 : vector<8x128xf32>
    %cst_7 = arith.constant 0.000000e+00 : f32
    %24 = vector.broadcast %cst_7 : f32 to vector<8x128xf32>
    %25 = arith.select %23, %20, %24 : vector<8x128xi1>, vector<8x128xf32>
    %c0_8 = arith.constant 0 : index
    %c0_9 = arith.constant 0 : index
    %c0_10 = arith.constant 0 : index
    %26 = vector.load %arg3[%c0_8, %c0_9, %c0_10] : memref<8x8x128xf32, #tpu.memory_space<vmem>>, vector<1x8x128xf32>
    %27 = vector.shape_cast %26 : vector<1x8x128xf32> to vector<8x128xf32>
    %28 = vector.shape_cast %25 : vector<8x128xf32> to vector<1x8x128xf32>
    tpu.vector_store %arg3[%c0_8, %c0_9, %c0_10], %28 {strides = array<i32>} : memref<8x8x128xf32, #tpu.memory_space<vmem>>, vector<1x8x128xf32>,
    %29 = arith.subf %20, %25 : vector<8x128xf32>
    %c1_11 = arith.constant 1 : index
    %c0_12 = arith.constant 0 : index
    %c0_13 = arith.constant 0 : index
    %30 = vector.load %arg2[%c1_11, %c0_12, %c0_13] : memref<8x8x128xf32, #tpu.memory_space<vmem>>, vector<1x8x128xf32>
    %31 = vector.shape_cast %30 : vector<1x8x128xf32> to vector<8x128xf32>
    %cst_14 = arith.constant 3.200000e+01 : f32
    %32 = vector.broadcast %cst_14 : f32 to vector<8x128xf32>
    %33 = arith.mulf %31, %32 : vector<8x128xf32>
    %34 = math.roundeven %33 : vector<8x128xf32>
    %cst_15 = arith.constant 3.125000e-02 : f32
    %35 = vector.broadcast %cst_15 : f32 to vector<8x128xf32>
    %36 = arith.mulf %34, %35 : vector<8x128xf32>
    %cst_16 = arith.constant -4.000000e+00 : f32
    %cst_17 = arith.constant 3.984375 : f32
    %37 = vector.broadcast %cst_16 : f32 to vector<8x128xf32>
    %38 = arith.maximumf %37, %36 : vector<8x128xf32>
    %39 = vector.broadcast %cst_17 : f32 to vector<8x128xf32>
    %40 = arith.minimumf %39, %38 : vector<8x128xf32>
    %41 = vector.broadcast %0 : f32 to vector<8x128xf32>
    %42 = arith.mulf %40, %41 : vector<8x128xf32>
    %43 = vector.broadcast %1 : f32 to vector<8x128xf32>
    %44 = arith.addf %42, %43 : vector<8x128xf32>
    %45 = arith.subf %44, %18 : vector<8x128xf32>
    %46 = arith.addf %45, %29 : vector<8x128xf32>
    %47 = math.absf %46 : vector<8x128xf32>
    %48 = vector.broadcast %2 : f32 to vector<8x128xf32>
    %49 = arith.cmpf oge, %47, %48 : vector<8x128xf32>
    %cst_18 = arith.constant 0.000000e+00 : f32
    %50 = vector.broadcast %cst_18 : f32 to vector<8x128xf32>
    %51 = arith.select %49, %46, %50 : vector<8x128xi1>, vector<8x128xf32>
    %c1_19 = arith.constant 1 : index
    %c0_20 = arith.constant 0 : index
    %c0_21 = arith.constant 0 : index
    %52 = vector.load %arg3[%c1_19, %c0_20, %c0_21] : memref<8x8x128xf32, #tpu.memory_space<vmem>>, vector<1x8x128xf32>
    %53 = vector.shape_cast %52 : vector<1x8x128xf32> to vector<8x128xf32>
    %54 = vector.shape_cast %51 : vector<8x128xf32> to vector<1x8x128xf32>
    tpu.vector_store %arg3[%c1_19, %c0_20, %c0_21], %54 {strides = array<i32>} : memref<8x8x128xf32, #tpu.memory_space<vmem>>, vector<1x8x128xf32>,
    %55 = arith.subf %46, %51 : vector<8x128xf32>
    %c2_22 = arith.constant 2 : index
    %c0_23 = arith.constant 0 : index
    %c0_24 = arith.constant 0 : index
    %56 = vector.load %arg2[%c2_22, %c0_23, %c0_24] : memref<8x8x128xf32, #tpu.memory_space<vmem>>, vector<1x8x128xf32>
    %57 = vector.shape_cast %56 : vector<1x8x128xf32> to vector<8x128xf32>
    %cst_25 = arith.constant 3.200000e+01 : f32
    %58 = vector.broadcast %cst_25 : f32 to vector<8x128xf32>
    %59 = arith.mulf %57, %58 : vector<8x128xf32>
    %60 = math.roundeven %59 : vector<8x128xf32>
    %cst_26 = arith.constant 3.125000e-02 : f32
    %61 = vector.broadcast %cst_26 : f32 to vector<8x128xf32>
    %62 = arith.mulf %60, %61 : vector<8x128xf32>
    %cst_27 = arith.constant -4.000000e+00 : f32
    %cst_28 = arith.constant 3.984375 : f32
    %63 = vector.broadcast %cst_27 : f32 to vector<8x128xf32>
    %64 = arith.maximumf %63, %62 : vector<8x128xf32>
    %65 = vector.broadcast %cst_28 : f32 to vector<8x128xf32>
    %66 = arith.minimumf %65, %64 : vector<8x128xf32>
    %67 = vector.broadcast %0 : f32 to vector<8x128xf32>
    %68 = arith.mulf %66, %67 : vector<8x128xf32>
    %69 = vector.broadcast %1 : f32 to vector<8x128xf32>
    %70 = arith.addf %68, %69 : vector<8x128xf32>
    %71 = arith.subf %70, %44 : vector<8x128xf32>
    %72 = arith.addf %71, %55 : vector<8x128xf32>
    %73 = math.absf %72 : vector<8x128xf32>
    %74 = vector.broadcast %2 : f32 to vector<8x128xf32>
    %75 = arith.cmpf oge, %73, %74 : vector<8x128xf32>
    %cst_29 = arith.constant 0.000000e+00 : f32
    %76 = vector.broadcast %cst_29 : f32 to vector<8x128xf32>
    %77 = arith.select %75, %72, %76 : vector<8x128xi1>, vector<8x128xf32>
    %c2_30 = arith.constant 2 : index
    %c0_31 = arith.constant 0 : index
    %c0_32 = arith.constant 0 : index
    %78 = vector.load %arg3[%c2_30, %c0_31, %c0_32] : memref<8x8x128xf32, #tpu.memory_space<vmem>>, vector<1x8x128xf32>
    %79 = vector.shape_cast %78 : vector<1x8x128xf32> to vector<8x128xf32>
    %80 = vector.shape_cast %77 : vector<8x128xf32> to vector<1x8x128xf32>
    tpu.vector_store %arg3[%c2_30, %c0_31, %c0_32], %80 {strides = array<i32>} : memref<8x8x128xf32, #tpu.memory_space<vmem>>, vector<1x8x128xf32>,
    %81 = arith.subf %72, %77 : vector<8x128xf32>
    %c3 = arith.constant 3 : index
    %c0_33 = arith.constant 0 : index
    %c0_34 = arith.constant 0 : index
    %82 = vector.load %arg2[%c3, %c0_33, %c0_34] : memref<8x8x128xf32, #tpu.memory_space<vmem>>, vector<1x8x128xf32>
    %83 = vector.shape_cast %82 : vector<1x8x128xf32> to vector<8x128xf32>
    %cst_35 = arith.constant 3.200000e+01 : f32
    %84 = vector.broadcast %cst_35 : f32 to vector<8x128xf32>
    %85 = arith.mulf %83, %84 : vector<8x128xf32>
    %86 = math.roundeven %85 : vector<8x128xf32>
    %cst_36 = arith.constant 3.125000e-02 : f32
    %87 = vector.broadcast %cst_36 : f32 to vector<8x128xf32>
    %88 = arith.mulf %86, %87 : vector<8x128xf32>
    %cst_37 = arith.constant -4.000000e+00 : f32
    %cst_38 = arith.constant 3.984375 : f32
    %89 = vector.broadcast %cst_37 : f32 to vector<8x128xf32>
    %90 = arith.maximumf %89, %88 : vector<8x128xf32>
    %91 = vector.broadcast %cst_38 : f32 to vector<8x128xf32>
    %92 = arith.minimumf %91, %90 : vector<8x128xf32>
    %93 = vector.broadcast %0 : f32 to vector<8x128xf32>
    %94 = arith.mulf %92, %93 : vector<8x128xf32>
    %95 = vector.broadcast %1 : f32 to vector<8x128xf32>
    %96 = arith.addf %94, %95 : vector<8x128xf32>
    %97 = arith.subf %96, %70 : vector<8x128xf32>
    %98 = arith.addf %97, %81 : vector<8x128xf32>
    %99 = math.absf %98 : vector<8x128xf32>
    %100 = vector.broadcast %2 : f32 to vector<8x128xf32>
    %101 = arith.cmpf oge, %99, %100 : vector<8x128xf32>
    %cst_39 = arith.constant 0.000000e+00 : f32
    %102 = vector.broadcast %cst_39 : f32 to vector<8x128xf32>
    %103 = arith.select %101, %98, %102 : vector<8x128xi1>, vector<8x128xf32>
    %c3_40 = arith.constant 3 : index
    %c0_41 = arith.constant 0 : index
    %c0_42 = arith.constant 0 : index
    %104 = vector.load %arg3[%c3_40, %c0_41, %c0_42] : memref<8x8x128xf32, #tpu.memory_space<vmem>>, vector<1x8x128xf32>
    %105 = vector.shape_cast %104 : vector<1x8x128xf32> to vector<8x128xf32>
    %106 = vector.shape_cast %103 : vector<8x128xf32> to vector<1x8x128xf32>
    tpu.vector_store %arg3[%c3_40, %c0_41, %c0_42], %106 {strides = array<i32>} : memref<8x8x128xf32, #tpu.memory_space<vmem>>, vector<1x8x128xf32>,
    %107 = arith.subf %98, %103 : vector<8x128xf32>
    %c4 = arith.constant 4 : index
    %c0_43 = arith.constant 0 : index
    %c0_44 = arith.constant 0 : index
    %108 = vector.load %arg2[%c4, %c0_43, %c0_44] : memref<8x8x128xf32, #tpu.memory_space<vmem>>, vector<1x8x128xf32>
    %109 = vector.shape_cast %108 : vector<1x8x128xf32> to vector<8x128xf32>
    %cst_45 = arith.constant 3.200000e+01 : f32
    %110 = vector.broadcast %cst_45 : f32 to vector<8x128xf32>
    %111 = arith.mulf %109, %110 : vector<8x128xf32>
    %112 = math.roundeven %111 : vector<8x128xf32>
    %cst_46 = arith.constant 3.125000e-02 : f32
    %113 = vector.broadcast %cst_46 : f32 to vector<8x128xf32>
    %114 = arith.mulf %112, %113 : vector<8x128xf32>
    %cst_47 = arith.constant -4.000000e+00 : f32
    %cst_48 = arith.constant 3.984375 : f32
    %115 = vector.broadcast %cst_47 : f32 to vector<8x128xf32>
    %116 = arith.maximumf %115, %114 : vector<8x128xf32>
    %117 = vector.broadcast %cst_48 : f32 to vector<8x128xf32>
    %118 = arith.minimumf %117, %116 : vector<8x128xf32>
    %119 = vector.broadcast %0 : f32 to vector<8x128xf32>
    %120 = arith.mulf %118, %119 : vector<8x128xf32>
    %121 = vector.broadcast %1 : f32 to vector<8x128xf32>
    %122 = arith.addf %120, %121 : vector<8x128xf32>
    %123 = arith.subf %122, %96 : vector<8x128xf32>
    %124 = arith.addf %123, %107 : vector<8x128xf32>
    %125 = math.absf %124 : vector<8x128xf32>
    %126 = vector.broadcast %2 : f32 to vector<8x128xf32>
    %127 = arith.cmpf oge, %125, %126 : vector<8x128xf32>
    %cst_49 = arith.constant 0.000000e+00 : f32
    %128 = vector.broadcast %cst_49 : f32 to vector<8x128xf32>
    %129 = arith.select %127, %124, %128 : vector<8x128xi1>, vector<8x128xf32>
    %c4_50 = arith.constant 4 : index
    %c0_51 = arith.constant 0 : index
    %c0_52 = arith.constant 0 : index
    %130 = vector.load %arg3[%c4_50, %c0_51, %c0_52] : memref<8x8x128xf32, #tpu.memory_space<vmem>>, vector<1x8x128xf32>
    %131 = vector.shape_cast %130 : vector<1x8x128xf32> to vector<8x128xf32>
    %132 = vector.shape_cast %129 : vector<8x128xf32> to vector<1x8x128xf32>
    tpu.vector_store %arg3[%c4_50, %c0_51, %c0_52], %132 {strides = array<i32>} : memref<8x8x128xf32, #tpu.memory_space<vmem>>, vector<1x8x128xf32>,
    %133 = arith.subf %124, %129 : vector<8x128xf32>
    %c5 = arith.constant 5 : index
    %c0_53 = arith.constant 0 : index
    %c0_54 = arith.constant 0 : index
    %134 = vector.load %arg2[%c5, %c0_53, %c0_54] : memref<8x8x128xf32, #tpu.memory_space<vmem>>, vector<1x8x128xf32>
    %135 = vector.shape_cast %134 : vector<1x8x128xf32> to vector<8x128xf32>
    %cst_55 = arith.constant 3.200000e+01 : f32
    %136 = vector.broadcast %cst_55 : f32 to vector<8x128xf32>
    %137 = arith.mulf %135, %136 : vector<8x128xf32>
    %138 = math.roundeven %137 : vector<8x128xf32>
    %cst_56 = arith.constant 3.125000e-02 : f32
    %139 = vector.broadcast %cst_56 : f32 to vector<8x128xf32>
    %140 = arith.mulf %138, %139 : vector<8x128xf32>
    %cst_57 = arith.constant -4.000000e+00 : f32
    %cst_58 = arith.constant 3.984375 : f32
    %141 = vector.broadcast %cst_57 : f32 to vector<8x128xf32>
    %142 = arith.maximumf %141, %140 : vector<8x128xf32>
    %143 = vector.broadcast %cst_58 : f32 to vector<8x128xf32>
    %144 = arith.minimumf %143, %142 : vector<8x128xf32>
    %145 = vector.broadcast %0 : f32 to vector<8x128xf32>
    %146 = arith.mulf %144, %145 : vector<8x128xf32>
    %147 = vector.broadcast %1 : f32 to vector<8x128xf32>
    %148 = arith.addf %146, %147 : vector<8x128xf32>
    %149 = arith.subf %148, %122 : vector<8x128xf32>
    %150 = arith.addf %149, %133 : vector<8x128xf32>
    %151 = math.absf %150 : vector<8x128xf32>
    %152 = vector.broadcast %2 : f32 to vector<8x128xf32>
    %153 = arith.cmpf oge, %151, %152 : vector<8x128xf32>
    %cst_59 = arith.constant 0.000000e+00 : f32
    %154 = vector.broadcast %cst_59 : f32 to vector<8x128xf32>
    %155 = arith.select %153, %150, %154 : vector<8x128xi1>, vector<8x128xf32>
    %c5_60 = arith.constant 5 : index
    %c0_61 = arith.constant 0 : index
    %c0_62 = arith.constant 0 : index
    %156 = vector.load %arg3[%c5_60, %c0_61, %c0_62] : memref<8x8x128xf32, #tpu.memory_space<vmem>>, vector<1x8x128xf32>
    %157 = vector.shape_cast %156 : vector<1x8x128xf32> to vector<8x128xf32>
    %158 = vector.shape_cast %155 : vector<8x128xf32> to vector<1x8x128xf32>
    tpu.vector_store %arg3[%c5_60, %c0_61, %c0_62], %158 {strides = array<i32>} : memref<8x8x128xf32, #tpu.memory_space<vmem>>, vector<1x8x128xf32>,
    %159 = arith.subf %150, %155 : vector<8x128xf32>
    %c6 = arith.constant 6 : index
    %c0_63 = arith.constant 0 : index
    %c0_64 = arith.constant 0 : index
    %160 = vector.load %arg2[%c6, %c0_63, %c0_64] : memref<8x8x128xf32, #tpu.memory_space<vmem>>, vector<1x8x128xf32>
    %161 = vector.shape_cast %160 : vector<1x8x128xf32> to vector<8x128xf32>
    %cst_65 = arith.constant 3.200000e+01 : f32
    %162 = vector.broadcast %cst_65 : f32 to vector<8x128xf32>
    %163 = arith.mulf %161, %162 : vector<8x128xf32>
    %164 = math.roundeven %163 : vector<8x128xf32>
    %cst_66 = arith.constant 3.125000e-02 : f32
    %165 = vector.broadcast %cst_66 : f32 to vector<8x128xf32>
    %166 = arith.mulf %164, %165 : vector<8x128xf32>
    %cst_67 = arith.constant -4.000000e+00 : f32
    %cst_68 = arith.constant 3.984375 : f32
    %167 = vector.broadcast %cst_67 : f32 to vector<8x128xf32>
    %168 = arith.maximumf %167, %166 : vector<8x128xf32>
    %169 = vector.broadcast %cst_68 : f32 to vector<8x128xf32>
    %170 = arith.minimumf %169, %168 : vector<8x128xf32>
    %171 = vector.broadcast %0 : f32 to vector<8x128xf32>
    %172 = arith.mulf %170, %171 : vector<8x128xf32>
    %173 = vector.broadcast %1 : f32 to vector<8x128xf32>
    %174 = arith.addf %172, %173 : vector<8x128xf32>
    %175 = arith.subf %174, %148 : vector<8x128xf32>
    %176 = arith.addf %175, %159 : vector<8x128xf32>
    %177 = math.absf %176 : vector<8x128xf32>
    %178 = vector.broadcast %2 : f32 to vector<8x128xf32>
    %179 = arith.cmpf oge, %177, %178 : vector<8x128xf32>
    %cst_69 = arith.constant 0.000000e+00 : f32
    %180 = vector.broadcast %cst_69 : f32 to vector<8x128xf32>
    %181 = arith.select %179, %176, %180 : vector<8x128xi1>, vector<8x128xf32>
    %c6_70 = arith.constant 6 : index
    %c0_71 = arith.constant 0 : index
    %c0_72 = arith.constant 0 : index
    %182 = vector.load %arg3[%c6_70, %c0_71, %c0_72] : memref<8x8x128xf32, #tpu.memory_space<vmem>>, vector<1x8x128xf32>
    %183 = vector.shape_cast %182 : vector<1x8x128xf32> to vector<8x128xf32>
    %184 = vector.shape_cast %181 : vector<8x128xf32> to vector<1x8x128xf32>
    tpu.vector_store %arg3[%c6_70, %c0_71, %c0_72], %184 {strides = array<i32>} : memref<8x8x128xf32, #tpu.memory_space<vmem>>, vector<1x8x128xf32>,
    %185 = arith.subf %176, %181 : vector<8x128xf32>
    %c7 = arith.constant 7 : index
    %c0_73 = arith.constant 0 : index
    %c0_74 = arith.constant 0 : index
    %186 = vector.load %arg2[%c7, %c0_73, %c0_74] : memref<8x8x128xf32, #tpu.memory_space<vmem>>, vector<1x8x128xf32>
    %187 = vector.shape_cast %186 : vector<1x8x128xf32> to vector<8x128xf32>
    %cst_75 = arith.constant 3.200000e+01 : f32
    %188 = vector.broadcast %cst_75 : f32 to vector<8x128xf32>
    %189 = arith.mulf %187, %188 : vector<8x128xf32>
    %190 = math.roundeven %189 : vector<8x128xf32>
    %cst_76 = arith.constant 3.125000e-02 : f32
    %191 = vector.broadcast %cst_76 : f32 to vector<8x128xf32>
    %192 = arith.mulf %190, %191 : vector<8x128xf32>
    %cst_77 = arith.constant -4.000000e+00 : f32
    %cst_78 = arith.constant 3.984375 : f32
    %193 = vector.broadcast %cst_77 : f32 to vector<8x128xf32>
    %194 = arith.maximumf %193, %192 : vector<8x128xf32>
    %195 = vector.broadcast %cst_78 : f32 to vector<8x128xf32>
    %196 = arith.minimumf %195, %194 : vector<8x128xf32>
    %197 = vector.broadcast %0 : f32 to vector<8x128xf32>
    %198 = arith.mulf %196, %197 : vector<8x128xf32>
    %199 = vector.broadcast %1 : f32 to vector<8x128xf32>
    %200 = arith.addf %198, %199 : vector<8x128xf32>
    %201 = arith.subf %200, %174 : vector<8x128xf32>
    %202 = arith.addf %201, %185 : vector<8x128xf32>
    %203 = math.absf %202 : vector<8x128xf32>
    %204 = vector.broadcast %2 : f32 to vector<8x128xf32>
    %205 = arith.cmpf oge, %203, %204 : vector<8x128xf32>
    %cst_79 = arith.constant 0.000000e+00 : f32
    %206 = vector.broadcast %cst_79 : f32 to vector<8x128xf32>
    %207 = arith.select %205, %202, %206 : vector<8x128xi1>, vector<8x128xf32>
    %c7_80 = arith.constant 7 : index
    %c0_81 = arith.constant 0 : index
    %c0_82 = arith.constant 0 : index
    %208 = vector.load %arg3[%c7_80, %c0_81, %c0_82] : memref<8x8x128xf32, #tpu.memory_space<vmem>>, vector<1x8x128xf32>
    %209 = vector.shape_cast %208 : vector<1x8x128xf32> to vector<8x128xf32>
    %210 = vector.shape_cast %207 : vector<8x128xf32> to vector<1x8x128xf32>
    tpu.vector_store %arg3[%c7_80, %c0_81, %c0_82], %210 {strides = array<i32>} : memref<8x8x128xf32, #tpu.memory_space<vmem>>, vector<1x8x128xf32>,
    return
  }
  func.func @transform_0(%arg0: i32) -> i32 {
    %c0_i32 = arith.constant 0 : i32
    %c0_i32_0 = arith.constant 0 : i32
    return %c0_i32 : i32
  }
  func.func @transform_1(%arg0: i32) -> (i32, i32, i32) {
    %c0_i32 = arith.constant 0 : i32
    %c0_i32_0 = arith.constant 0 : i32
    %c0_i32_1 = arith.constant 0 : i32
    return %c0_i32, %arg0, %c0_i32_0 : i32, i32, i32
  }
  func.func @transform_2(%arg0: i32) -> (i32, i32, i32) {
    %c0_i32 = arith.constant 0 : i32
    %c0_i32_0 = arith.constant 0 : i32
    %c0_i32_1 = arith.constant 0 : i32
    return %c0_i32, %arg0, %c0_i32_0 : i32, i32, i32
  }
}

</mosaic_0001>

<llo_original>
// kernel: tpu_custom_call.1
$region0: #{tpu_custom_call.1}
  #allocation0 [shape = 'u32[]', space=smem, size = 0x4, offset = 0x4, fixed_abs, tag = 'smem constant byte address 0x4 - core index']
  #allocation1 [shape = 'u32[144,128]{1,0:T(1,128)}', space=vmem, size = 0x12000, scoped, tag = 'internal scratch']
  %s0 = inlined_call_operand.hbm [shape: f32[3], index: 0, kind: input, shape index: {}]
  %s1 = inlined_call_operand.hbm [shape: f32[8,16,128], index: 1, kind: input, shape index: {}]
  %s2 = inlined_call_operand.hbm [shape: f32[8,16,128], index: 2, kind: output, shape index: {}]
  %s3 = sld [smem:[#allocation0]]
  $region49: #{tpu_custom_call.1} parent=0
    _
  %s5 = ssub.s32 1, %s3
  %s6 = scalar_select 0, %s5, %s3
  $region1: #{tpu_custom_call.1} parent=0
    #allocation2 [shape = 'u8[512]{0}', space=smem, size = 0x200, scoped, tag = 'input window, operand 0, single buffered']
    #allocation3 [shape = 's32[2]{0}', space=sflag, size = 0x8, scoped, tag = 'scoped memory for tpu_custom_call.1']
    #allocation4 [shape = 's32[2]{0}', space=sflag, size = 0x8, scoped, tag = 'scoped memory for tpu_custom_call.1']
    #allocation5 [shape = 's32[2]{0}', space=sflag, size = 0x8, scoped, tag = 'scoped memory for tpu_custom_call.1']
    #allocation6 [shape = 'u8[65536]{0}', space=vmem, size = 0x10000, scoped, tag = 'input window, operand 1']
    #allocation7 [shape = 'u8[65536]{0}', space=vmem, size = 0x10000, scoped, tag = 'output window, operand 0']
    %7 = vsyncpa [#allocation5], 0
    %8 = vsyncpa [#allocation3], 0
    %s9 = scalar_lea.sflag [#allocation3], 1
    %10 = vsyncpa %s9, 0
    %11 = vsyncpa [#allocation4], 0
    %s12 = scalar_lea.sflag [#allocation4], 1
    %13 = vsyncpa %s12, 0
    loop: start=0, step=1, limit=4
    $region2: #{tpu_custom_call.1} parent=1 // loop_pre_header
      _
    $region3: #{tpu_custom_call.1} parent=1 // loop_header
      %s15 = sphi 0, %s19
      %p16 = scmp.ge.s32.totalorder %s15, 4
      %s23 = sphi 0, %s23
      %s25 = sphi 0, %s23
      %s26 = sphi 0, %s25
      %s40 = sphi 0, %s26
      %s46 = sphi 0, %s48
      %s49 = sphi 0, %s46
      %s50 = sphi 0, %s49
      %s66 = sphi 0, %s50
      %s72 = sphi 0, %s74
      %s75 = sphi 0, %s72
      %s76 = sphi 0, %s75
      %s92 = sphi 0, %s76
    $region4: #{tpu_custom_call.1} parent=1 // loop_header_branch
      %18 = sbr.rel (%p16) target = $region8
    $region5: #{tpu_custom_call.1} parent=1 // loop_body
      %s20 = ssub.s32 %s15, 1
      %s21 = ssub.s32 %s15, 2
      %s22 = sadd.s32 %s15, 1
      %s24 = sadd.s32 %s23, 1
      %p27 = scmp.eq.s32.totalorder %s15, 1
      %p28 = scmp.ne.s32.totalorder %s23, %s25
      %p29 = scmp.eq.s32.totalorder %s15, 0
      %p30 = por %p28, %p29
      %p31 = scmp.ne.s32.totalorder %s23, %s25
      %p32 = scmp.eq.s32.totalorder %s20, 1
      %p33 = por %p31, %p32
      %p34 = scmp.ne.s32.totalorder %s25, %s26
      %p35 = scmp.eq.s32.totalorder %s20, 0
      %p36 = por %p34, %p35
      %p37 = scmp.ne.s32.totalorder %s25, %s26
      %p38 = scmp.eq.s32.totalorder %s21, 1
      %p39 = por %p37, %p38
      %p41 = scmp.ne.s32.totalorder %s26, %s40
      %p42 = scmp.eq.s32.totalorder %s21, 0
      %p43 = por %p41, %p42
      %s44 = ssub.s32 %s15, %s22
      %p45 = scmp.eq.s32.totalorder %s44, 0
      %s47 = sadd.s32 %s46, 1
      %s48 = scalar_select %p45, %s46, %s47
      %p51 = pneg %p45
      %p52 = scmp.eq.s32.totalorder %s15, 1
      %p53 = por %p51, %p52
      %p54 = scmp.ne.s32.totalorder %s46, %s49
      %p55 = scmp.eq.s32.totalorder %s15, 0
      %p56 = por %p54, %p55
      %p57 = scmp.ne.s32.totalorder %s46, %s49
      %p58 = scmp.eq.s32.totalorder %s20, 1
      %p59 = por %p57, %p58
      %p60 = scmp.ne.s32.totalorder %s49, %s50
      %p61 = scmp.eq.s32.totalorder %s20, 0
      %p62 = por %p60, %p61
      %p63 = scmp.ne.s32.totalorder %s49, %s50
      %p64 = scmp.eq.s32.totalorder %s21, 1
      %p65 = por %p63, %p64
      %p67 = scmp.ne.s32.totalorder %s50, %s66
      %p68 = scmp.eq.s32.totalorder %s21, 0
      %p69 = por %p67, %p68
      %s70 = ssub.s32 %s15, %s22
      %p71 = scmp.eq.s32.totalorder %s70, 0
      %s73 = sadd.s32 %s72, 1
      %s74 = scalar_select %p71, %s72, %s73
      %p77 = pneg %p71
      %p78 = scmp.eq.s32.totalorder %s15, 1
      %p79 = por %p77, %p78
      %p80 = scmp.ne.s32.totalorder %s72, %s75
      %p81 = scmp.eq.s32.totalorder %s15, 0
      %p82 = por %p80, %p81
      %p83 = scmp.ne.s32.totalorder %s72, %s75
      %p84 = scmp.eq.s32.totalorder %s20, 1
      %p85 = por %p83, %p84
      %p86 = scmp.ne.s32.totalorder %s75, %s76
      %p87 = scmp.eq.s32.totalorder %s20, 0
      %p88 = por %p86, %p87
      %p89 = scmp.ne.s32.totalorder %s75, %s76
      %p90 = scmp.eq.s32.totalorder %s21, 1
      %p91 = por %p89, %p90
      %p93 = scmp.ne.s32.totalorder %s76, %s92
      %p94 = scmp.eq.s32.totalorder %s21, 0
      %p95 = por %p93, %p94
      %p96 = scmp.le.s32.totalorder 1, %s15
      %p97 = scmp.lt.s32.totalorder %s15, 3
      %p98 = pnand %p96, %p97
      %p99 = pneg %p98
      // Predicated region
      $region9: #{tpu_custom_call.1} parent=5 // pred_check
        _
      $region10: #{tpu_custom_call.1} parent=5 // pred_check_branch
        %101 = sbr.rel (%p98) target = $region12
      $region11: #{tpu_custom_call.1} parent=5 // pred_region
        %s102 = ssub.s32 %s15, 1
        // Predicated region
        $region13: #{tpu_custom_call.1} parent=11 // pred_check
          %p103 = pneg %p36
        $region14: #{tpu_custom_call.1} parent=11 // pred_check_branch
          %105 = sbr.rel (%p103) target = $region16
        $region15: #{tpu_custom_call.1} parent=11 // pred_region
          %s107 = ssub.s32 16, 16
          %108 = vsyncadd [#allocation5], %s107
          %111 = dma.hbm_to_smem %s0, 16, [#allocation2], [#allocation5]
        $region16: #{tpu_custom_call.1} parent=11 // pred_fallthru
          _
      $region12: #{tpu_custom_call.1} parent=5 // pred_fallthru
        _
      %p112 = scmp.lt.s32.totalorder %s15, 2
      // Predicated region
      $region17: #{tpu_custom_call.1} parent=5 // pred_check
        %p113 = pneg %p112
      $region18: #{tpu_custom_call.1} parent=5 // pred_check_branch
        %115 = sbr.rel (%p113) target = $region20
      $region19: #{tpu_custom_call.1} parent=5 // pred_region
        // Predicated region
        $region21: #{tpu_custom_call.1} parent=19 // pred_check
          %p116 = pneg %p56
        $region22: #{tpu_custom_call.1} parent=19 // pred_check_branch
          %118 = sbr.rel (%p116) target = $region24
        $region23: #{tpu_custom_call.1} parent=19 // pred_region
          %s119 = sand.u32 %s46, 1
          %s120 = scalar_lea.sflag [#allocation3], %s119
          %s121 = sand.u32 %s46, 1
          %s122 = smul.addr %s121, 64
          %s123 = scalar_lea.vmem [#allocation6], %s122
          %s125 = ssub.s32 1024, 1024
          %126 = vsyncadd %s120, %s125
          %s127 = smul.addr %s15, 128
          %s128 = scalar_lea.hbm %s1, %s127
          %s129 = sshll.u32 %s123, 4
          %s130 = int_to_ptr.vmem [resolvable:$true] %s129
          %135 = dma.hbm_to_vmem [thread:$0]  %s128, 1024, %s130, %s120, 256, 128, 8
        $region24: #{tpu_custom_call.1} parent=19 // pred_fallthru
          _
      $region20: #{tpu_custom_call.1} parent=5 // pred_fallthru
        _
      %p136 = scmp.le.s32.totalorder 1, %s15
      %p137 = scmp.lt.s32.totalorder %s15, 3
      %p138 = pnand %p136, %p137
      %p139 = pneg %p138
      // Predicated region
      $region25: #{tpu_custom_call.1} parent=5 // pred_check
        _
      $region26: #{tpu_custom_call.1} parent=5 // pred_check_branch
        %141 = sbr.rel (%p138) target = $region28
      $region27: #{tpu_custom_call.1} parent=5 // pred_region
        %s142 = ssub.s32 %s15, 1
        // Predicated region
        $region29: #{tpu_custom_call.1} parent=27 // pred_check
          %p143 = pneg %p36
        $region30: #{tpu_custom_call.1} parent=27 // pred_check_branch
          %145 = sbr.rel (%p143) target = $region32
        $region31: #{tpu_custom_call.1} parent=27 // pred_region
          %146 = dma.done [#allocation5], 16
        $region32: #{tpu_custom_call.1} parent=27 // pred_fallthru
          _
        %s147 = sand.u32 %s49, 1
        %s148 = scalar_lea.sflag [#allocation3], %s147
        %s149 = sand.u32 %s49, 1
        %s150 = smul.addr %s149, 64
        %s151 = scalar_lea.vmem [#allocation6], %s150
        // Predicated region
        $region33: #{tpu_custom_call.1} parent=27 // pred_check
          %p152 = pneg %p62
        $region34: #{tpu_custom_call.1} parent=27 // pred_check_branch
          %154 = sbr.rel (%p152) target = $region36
        $region35: #{tpu_custom_call.1} parent=27 // pred_region
          %155 = dma.done %s148, 1024
        $region36: #{tpu_custom_call.1} parent=27 // pred_fallthru
          _
        %156 = sfence
        %p157 = pneg %p36
        %p158 = pneg %p33
        %s159 = sand.u32 %s49, 1
        %s160 = scalar_lea.sflag [#allocation3], %s159
        %s161 = sand.u32 %s49, 1
        %s162 = smul.addr %s161, 64
        %s163 = scalar_lea.vmem [#allocation6], %s162
        %p164 = pneg %p62
        %p165 = pneg %p59
        %p166 = pneg %p88
        %p167 = pneg %p85
        %s168 = sand.u32 %s75, 1
        %s169 = scalar_lea.sflag [#allocation4], %s168
        %s170 = sand.u32 %s75, 1
        %s171 = smul.addr %s170, 64
        %s172 = scalar_lea.vmem [#allocation7], %s171
        %s173 = sld [smem:[#allocation2]]
        %s174 = sld [smem:[#allocation2 + $0x1]]
        %s175 = sld [smem:[#allocation2 + $0x2]]
        %v176 = vld [vmem:[%s151] sm:$0xff]
        %v177 = vmul.f32 %v176, 32.0
        %v178 = vround.ne.pseudo %v177
        %v179 = vmul.f32 %v178, 0.03125
        %v180 = vmax.f32 %v179, -4.0
        %v181 = vmin.f32 %v180, 3.984375
        %v182 = vstv %s173
        %v183 = vmul.f32 %v181, %v182
        %v184 = vstv %s174
        %v185 = vadd.f32 %v183, %v184
        %v186 = vadd.f32 %v185, 0.0
        %v187 = vand.u32 2147483647, %v186
        %v188 = vstv %s175
        %vm189 = vcmp.ge.f32.partialorder %v187, %v188
        %v190 = vsel %vm189, %v186, 0.0
        %191 = vst [vmem:[%s172] sm:$0xff] %v190
        %v192 = vsub.f32 %v186, %v190
        %s193 = scalar_lea.vmem %s151, 8 [#allocation6]
        %v194 = vld [vmem:[%s193] sm:$0xff]
        %v195 = vmul.f32 %v194, 32.0
        %v196 = vround.ne.pseudo %v195
        %v197 = vmul.f32 %v196, 0.03125
        %v198 = vmax.f32 %v197, -4.0
        %v199 = vmin.f32 %v198, 3.984375
        %v200 = vmul.f32 %v199, %v182
        %v201 = vadd.f32 %v200, %v184
        %v202 = vsub.f32 %v201, %v185
        %v203 = vadd.f32 %v202, %v192
        %v204 = vand.u32 2147483647, %v203
        %vm205 = vcmp.ge.f32.partialorder %v204, %v188
        %v206 = vsel %vm205, %v203, 0.0
        %s207 = scalar_lea.vmem %s172, 8 [#allocation7]
        %208 = vst [vmem:[%s207] sm:$0xff] %v206
        %v209 = vsub.f32 %v203, %v206
        %s210 = scalar_lea.vmem %s151, 16 [#allocation6]
        %v211 = vld [vmem:[%s210] sm:$0xff]
        %v212 = vmul.f32 %v211, 32.0
        %v213 = vround.ne.pseudo %v212
        %v214 = vmul.f32 %v213, 0.03125
        %v215 = vmax.f32 %v214, -4.0
        %v216 = vmin.f32 %v215, 3.984375
        %v217 = vmul.f32 %v216, %v182
        %v218 = vadd.f32 %v217, %v184
        %v219 = vsub.f32 %v218, %v201
        %v220 = vadd.f32 %v219, %v209
        %v221 = vand.u32 2147483647, %v220
        %vm222 = vcmp.ge.f32.partialorder %v221, %v188
        %v223 = vsel %vm222, %v220, 0.0
        %s224 = scalar_lea.vmem %s172, 16 [#allocation7]
        %225 = vst [vmem:[%s224] sm:$0xff] %v223
        %v226 = vsub.f32 %v220, %v223
        %s227 = scalar_lea.vmem %s151, 24 [#allocation6]
        %v228 = vld [vmem:[%s227] sm:$0xff]
        %v229 = vmul.f32 %v228, 32.0
        %v230 = vround.ne.pseudo %v229
        %v231 = vmul.f32 %v230, 0.03125
        %v232 = vmax.f32 %v231, -4.0
        %v233 = vmin.f32 %v232, 3.984375
        %v234 = vmul.f32 %v233, %v182
        %v235 = vadd.f32 %v234, %v184
        %v236 = vsub.f32 %v235, %v218
        %v237 = vadd.f32 %v236, %v226
        %v238 = vand.u32 2147483647, %v237
        %vm239 = vcmp.ge.f32.partialorder %v238, %v188
        %v240 = vsel %vm239, %v237, 0.0
        %s241 = scalar_lea.vmem %s172, 24 [#allocation7]
        %242 = vst [vmem:[%s241] sm:$0xff] %v240
        %v243 = vsub.f32 %v237, %v240
        %s244 = scalar_lea.vmem %s151, 32 [#allocation6]
        %v245 = vld [vmem:[%s244] sm:$0xff]
        %v246 = vmul.f32 %v245, 32.0
        %v247 = vround.ne.pseudo %v246
        %v248 = vmul.f32 %v247, 0.03125
        %v249 = vmax.f32 %v248, -4.0
        %v250 = vmin.f32 %v249, 3.984375
        %v251 = vmul.f32 %v250, %v182
        %v252 = vadd.f32 %v251, %v184
        %v253 = vsub.f32 %v252, %v235
        %v254 = vadd.f32 %v253, %v243
        %v255 = vand.u32 2147483647, %v254
        %vm256 = vcmp.ge.f32.partialorder %v255, %v188
        %v257 = vsel %vm256, %v254, 0.0
        %s258 = scalar_lea.vmem %s172, 32 [#allocation7]
        %259 = vst [vmem:[%s258] sm:$0xff] %v257
        %v260 = vsub.f32 %v254, %v257
        %s261 = scalar_lea.vmem %s151, 40 [#allocation6]
        %v262 = vld [vmem:[%s261] sm:$0xff]
        %v263 = vmul.f32 %v262, 32.0
        %v264 = vround.ne.pseudo %v263
        %v265 = vmul.f32 %v264, 0.03125
        %v266 = vmax.f32 %v265, -4.0
        %v267 = vmin.f32 %v266, 3.984375
        %v268 = vmul.f32 %v267, %v182
        %v269 = vadd.f32 %v268, %v184
        %v270 = vsub.f32 %v269, %v252
        %v271 = vadd.f32 %v270, %v260
        %v272 = vand.u32 2147483647, %v271
        %vm273 = vcmp.ge.f32.partialorder %v272, %v188
        %v274 = vsel %vm273, %v271, 0.0
        %s275 = scalar_lea.vmem %s172, 40 [#allocation7]
        %276 = vst [vmem:[%s275] sm:$0xff] %v274
        %v277 = vsub.f32 %v271, %v274
        %s278 = scalar_lea.vmem %s151, 48 [#allocation6]
        %v279 = vld [vmem:[%s278] sm:$0xff]
        %v280 = vmul.f32 %v279, 32.0
        %v281 = vround.ne.pseudo %v280
        %v282 = vmul.f32 %v281, 0.03125
        %v283 = vmax.f32 %v282, -4.0
        %v284 = vmin.f32 %v283, 3.984375
        %v285 = vmul.f32 %v284, %v182
        %v286 = vadd.f32 %v285, %v184
        %v287 = vsub.f32 %v286, %v269
        %v288 = vadd.f32 %v287, %v277
        %v289 = vand.u32 2147483647, %v288
        %vm290 = vcmp.ge.f32.partialorder %v289, %v188
        %v291 = vsel %vm290, %v288, 0.0
        %s292 = scalar_lea.vmem %s172, 48 [#allocation7]
        %293 = vst [vmem:[%s292] sm:$0xff] %v291
        %v294 = vsub.f32 %v288, %v291
        %s295 = scalar_lea.vmem %s151, 56 [#allocation6]
        %v296 = vld [vmem:[%s295] sm:$0xff]
        %v297 = vmul.f32 %v296, 32.0
        %v298 = vround.ne.pseudo %v297
        %v299 = vmul.f32 %v298, 0.03125
        %v300 = vmax.f32 %v299, -4.0
        %v301 = vmin.f32 %v300, 3.984375
        %v302 = vmul.f32 %v301, %v182
        %v303 = vadd.f32 %v302, %v184
        %v304 = vsub.f32 %v303, %v286
        %v305 = vadd.f32 %v304, %v294
        %v306 = vand.u32 2147483647, %v305
        %vm307 = vcmp.ge.f32.partialorder %v306, %v188
        %v308 = vsel %vm307, %v305, 0.0
        %s309 = scalar_lea.vmem %s172, 56 [#allocation7]
        %310 = vst [vmem:[%s309] sm:$0xff] %v308
        %s311 = sand.u32 %s75, 1
        %s312 = scalar_lea.sflag [#allocation4], %s311
        %s313 = sand.u32 %s75, 1
        %s314 = smul.addr %s313, 64
        %s315 = scalar_lea.vmem [#allocation7], %s314
        // Predicated region
        $region37: #{tpu_custom_call.1} parent=27 // pred_check
          %p316 = pneg %p85
        $region38: #{tpu_custom_call.1} parent=27 // pred_check_branch
          %318 = sbr.rel (%p316) target = $region40
        $region39: #{tpu_custom_call.1} parent=27 // pred_region
          %s320 = ssub.s32 1024, 1024
          %321 = vsyncadd %s312, %s320
          %s322 = smul.addr %s20, 128
          %s323 = scalar_lea.hbm %s2, %s322
          %s324 = sshll.u32 %s315, 4
          %s325 = int_to_ptr.vmem [resolvable:$true] %s324
          %330 = dma.vmem_to_hbm [thread:$0]  %s325, 1024, %s323, %s312, 128, 256, 8
        $region40: #{tpu_custom_call.1} parent=27 // pred_fallthru
          _
      $region28: #{tpu_custom_call.1} parent=5 // pred_fallthru
        _
      %p331 = scmp.le.s32.totalorder 2, %s15
      // Predicated region
      $region41: #{tpu_custom_call.1} parent=5 // pred_check
        %p332 = pneg %p331
      $region42: #{tpu_custom_call.1} parent=5 // pred_check_branch
        %334 = sbr.rel (%p332) target = $region44
      $region43: #{tpu_custom_call.1} parent=5 // pred_region
        %s335 = ssub.s32 %s15, 2
        // Predicated region
        $region45: #{tpu_custom_call.1} parent=43 // pred_check
          %p336 = pneg %p91
        $region46: #{tpu_custom_call.1} parent=43 // pred_check_branch
          %338 = sbr.rel (%p336) target = $region48
        $region47: #{tpu_custom_call.1} parent=43 // pred_region
          %s339 = sand.u32 %s76, 1
          %s340 = scalar_lea.sflag [#allocation4], %s339
          %s341 = sand.u32 %s76, 1
          %s342 = smul.addr %s341, 64
          %s343 = scalar_lea.vmem [#allocation7], %s342
          %344 = dma.done %s340, 1024
        $region48: #{tpu_custom_call.1} parent=43 // pred_fallthru
          _
      $region44: #{tpu_custom_call.1} parent=5 // pred_fallthru
        _
    $region6: #{tpu_custom_call.1} parent=1 // loop_footer
      %s19 = sadd.s32 1, %s15
    $region7: #{tpu_custom_call.1} parent=1 // loop_footer_branch
      %14 = sbr.rel target = $region3
    $region8: #{tpu_custom_call.1} parent=1 // loop_exit
      _
    %345 = vsyncpa [#allocation3], 1
    %s346 = scalar_lea.sflag [#allocation3], 1
    %347 = vsyncpa %s346, 1
    %348 = vsyncpa [#allocation4], 1
    %s349 = scalar_lea.sflag [#allocation4], 1
    %350 = vsyncpa %s349, 1
    %351 = vsyncpa [#allocation5], 1
    %s352 = scalar_lea.sflag [#allocation5], 1
    %353 = vsyncpa %s352, 1

</llo_original>
